<compile_context>
chip_gen: v5e
topology: v5e:2x2
jax: 0.10.0
libtpu: 0.0.40
codegen_flags: <defaults>
</compile_context>

<pallas_src>
import math

import jax
import jax.numpy as jnp
from jax import lax
from jax.experimental import pallas as pl
from jax.experimental.pallas import tpu as pltpu


# ----------------------------------------------------------------------------
# Kernels
# ----------------------------------------------------------------------------
def _mix_shift(x_ref, prev_ref, xk_ref):
    """Token-shifted channel mix for one (TM, D) tile, computed in f32."""
    x = x_ref[0].astype(jnp.float32)                       # (TM, D)
    xk = xk_ref[...]                                       # (1, D) f32
    prev = prev_ref[...].reshape(1, -1).astype(jnp.float32)  # (1, D): last row of prev tile
    tm = x.shape[0]
    # Row i <- x[i-1] via XLU rotate; row 0 (wrapped) fixed from the cross-tile
    # carry with a single full-tile select (no partial sub-row store).
    rolled = pltpu.roll(x, shift=1, axis=0)
    row = lax.broadcasted_iota(jnp.int32, (tm, x.shape[1]), 0)
    shifted = jnp.where(row == 0, prev, rolled)
    return x + (shifted - x) * xk                          # (TM, D) f32


def _cmix_kernel_resident(x_ref, prev_ref, xk_ref, wk_ref, wv_ref, o_ref):
    """Full hidden dim resident in VMEM: no accumulator, no scratch."""
    k = _mix_shift(x_ref, prev_ref, xk_ref).astype(wk_ref.dtype)   # (TM, D) bf16
    kk = jnp.dot(k, wk_ref[...], preferred_element_type=jnp.float32)  # (TM, H)
    kk = jnp.maximum(kk, 0.0)
    kk = kk * kk
    o_ref[0] = jnp.dot(kk.astype(wv_ref.dtype), wv_ref[...],
                       preferred_element_type=jnp.float32).astype(o_ref.dtype)


def _cmix_kernel_chunked(x_ref, prev_ref, xk_ref, wk_ref, wv_ref, o_ref,
                         k_ref, acc_ref):
    """H-chunked fallback: f32 accumulator over the hidden (reduction) axis."""
    h = pl.program_id(2)
    nh = pl.num_programs(2)

    @pl.when(h == 0)
    def _prologue():
        k_ref[...] = _mix_shift(x_ref, prev_ref, xk_ref).astype(k_ref.dtype)
        acc_ref[...] = jnp.zeros_like(acc_ref)

    kk = jnp.dot(k_ref[...], wk_ref[...], preferred_element_type=jnp.float32)
    kk = jnp.maximum(kk, 0.0)
    kk = kk * kk
    acc_ref[...] += jnp.dot(kk.astype(wv_ref.dtype), wv_ref[...],
                            preferred_element_type=jnp.float32)

    @pl.when(h == nh - 1)
    def _epilogue():
        o_ref[0] = acc_ref[...].astype(o_ref.dtype)


# ----------------------------------------------------------------------------
# Wrapper
# ----------------------------------------------------------------------------
def prepare_cmix_params(x_k, w_key, w_value):
    """One-time parameter prep — call OUTSIDE the hot loop.

    x_k: (D,); w_key: (H, D) torch layout; w_value: (D, H) torch layout.
    Returns (xk2 (1, D) f32, wk (D, H) bf16, wv (H, D) bf16).
    """
    d = x_k.shape[0]
    xk2 = jnp.asarray(x_k, jnp.float32).reshape(1, d)
    wk = jnp.asarray(w_key, jnp.bfloat16).T       # (D, H)
    wv = jnp.asarray(w_value, jnp.bfloat16).T     # (H, D)
    return xk2, wk, wv


def _pick_tile(total, candidates):
    for c in candidates:
        if c <= total and total % c == 0:
            return c
    return total


def _vmem_capacity_bytes():
    """Per-core VMEM capacity; conservative 64 MiB fallback (v7x)."""
    try:
        info = pltpu.get_tpu_info()
        for name in ("vmem_capacity_bytes", "vmem_bytes", "vmem_size_bytes"):
            cap = getattr(info, name, None)
            if cap:
                return int(cap)
    except Exception:
        pass
    return 64 * 1024 * 1024


def cmix_forward_prepared(x, xk2, wk, wv, *, tm=None, th=None):
    """x: (B, T, D); xk2: (1, D) f32; wk: (D, H) bf16; wv: (H, D) bf16."""
    B, T, D = x.shape
    H = wk.shape[1]
    assert wk.shape == (D, H) and wv.shape == (H, D) and xk2.shape == (1, D)

    x_item = jnp.dtype(x.dtype).itemsize
    cap = _vmem_capacity_bytes()
    budget = int(cap * 0.70)                         # ~90 MiB on 128-MiB parts, ~45 MiB on v7x
    vmem_limit = min(int(cap * 0.90), 128 * 1024 * 1024)

    def footprint(tm_, th_):
        nh_ = H // th_
        w_bufs = 1 if nh_ == 1 else 2                # constant index_map -> weights resident
        w = w_bufs * 2 * (D * th_ + th_ * D)         # Wk + Wv chunks (bf16)
        x_t = 2 * tm_ * D * x_item                   # double-buffered x tile
        o_t = 2 * tm_ * D * x_item                   # double-buffered out tile
        kk = tm_ * th_ * (4 + 2)                     # f32 intermediate + bf16 copy
        scr = 0 if nh_ == 1 else tm_ * D * (2 + 4)   # k (bf16) + acc (f32) scratch
        misc = 2 * 1024 * 1024                       # compiler / misc slack
        return w + x_t + o_t + kk + scr + misc

    if tm is None:
        tm = _pick_tile(T, (256, 128, 64, 32, 16, 8))
    if th is None:
        th = H                                       # prefer resident weights
        th_floor = 512 if H % 512 == 0 else H        # keep 256-wide MXUs fed (v6e/v7x)
        while (footprint(tm, th) > budget and th > th_floor
               and th % 2 == 0 and (th // 2) % 128 == 0):
            th //= 2
        while (footprint(tm, th) > budget and tm > 8
               and tm % 2 == 0 and T % (tm // 2) == 0 and (tm // 2) % 8 == 0):
            tm //= 2
        # TODO(synk): if weights still don't fit, pl.Buffered(3) on Wk/Wv hides
        # the per-(b,t) weight-stream restart; skipped to keep VMEM accounting simple.

    # Silent-wrong-answer guard: fixed block shapes must tile T and H exactly.
    assert T % tm == 0, f"tm={tm} must divide T={T}"
    assert H % th == 0, f"th={th} must divide H={H}"
    assert tm == T or tm % 8 == 0, f"tm={tm} must be a multiple of 8 (or equal T)"
    assert th == H or th % 128 == 0, f"th={th} must be a multiple of 128 (or equal H)"

    nt = T // tm
    nh = H // th

    # Cross-tile token-shift rows precomputed here (tiny: B*nt rows), so there is
    # no sequential carry and BOTH B and T grid axes can be megacore-"parallel".
    last_rows = x[:, tm - 1::tm, :]                               # (B, nt, D)
    prev = jnp.concatenate(
        [jnp.zeros((B, 1, D), x.dtype), last_rows[:, :-1, :]], axis=1)
    prev = prev.reshape(B, nt, 1, D)

    if nh == 1:
        grid_spec = pltpu.PrefetchScalarGridSpec(
            num_scalar_prefetch=0,
            grid=(B, nt),
            in_specs=[
                pl.BlockSpec((1, tm, D), lambda b, t: (b, t, 0)),       # x tile
                pl.BlockSpec((1, 1, 1, D), lambda b, t: (b, t, 0, 0)),  # shift row
                pl.BlockSpec((1, D), lambda b, t: (0, 0)),              # x_k
                pl.BlockSpec((D, H), lambda b, t: (0, 0)),              # Wk (resident)
                pl.BlockSpec((H, D), lambda b, t: (0, 0)),              # Wv (resident)
            ],
            out_specs=pl.BlockSpec((1, tm, D), lambda b, t: (b, t, 0)),
        )
        kernel = _cmix_kernel_resident
        dims = ("parallel", "parallel")
    else:
        grid_spec = pltpu.PrefetchScalarGridSpec(
            num_scalar_prefetch=0,
            grid=(B, nt, nh),
            in_specs=[
                pl.BlockSpec((1, tm, D), lambda b, t, h: (b, t, 0)),
                pl.BlockSpec((1, 1, 1, D), lambda b, t, h: (b, t, 0, 0)),
                pl.BlockSpec((1, D), lambda b, t, h: (0, 0)),
                pl.BlockSpec((D, th), lambda b, t, h: (0, h)),          # Wk chunk
                pl.BlockSpec((th, D), lambda b, t, h: (h, 0)),          # Wv chunk
            ],
            out_specs=pl.BlockSpec((1, tm, D), lambda b, t, h: (b, t, 0)),
            scratch_shapes=[
                pltpu.VMEM((tm, D), jnp.bfloat16),    # mixed k (computed at h == 0)
                pltpu.VMEM((tm, D), jnp.float32),     # output accumulator
            ],
        )
        kernel = _cmix_kernel_chunked
        dims = ("parallel", "parallel", "arbitrary")

    return pl.pallas_call(
        kernel,
        out_shape=jax.ShapeDtypeStruct((B, T, D), x.dtype),
        grid_spec=grid_spec,
        compiler_params=pltpu.CompilerParams(
            dimension_semantics=dims,
            vmem_limit_bytes=vmem_limit,
        ),
    )(x, prev, xk2, wk, wv)


def cmix_forward(x, x_k, w_key, w_value, *, tm=None, th=None):
    """Convenience wrapper taking torch-layout params (prefer prepare_* once)."""
    xk2, wk, wv = prepare_cmix_params(x_k, w_key, w_value)
    return cmix_forward_prepared(x, xk2, wk, wv, tm=tm, th=th)


def cmix_reference(x, x_k, w_key, w_value):
    """Pure-JAX f32 reference mirroring the PyTorch forward."""
    B, T, D = x.shape
    shifted = jnp.concatenate(
        [jnp.zeros((B, 1, D), x.dtype), x[:, :-1, :]], axis=1)
    xx = shifted - x
    k = x + xx * x_k[None, None, :]
    k = jnp.maximum(k @ w_key.T, 0.0) ** 2
    return k @ w_value.T


# ----------------------------------------------------------------------------
# Self-test
# ----------------------------------------------------------------------------
if __name__ == "__main__":
    # Module hyperparameters (small but lane/MXU aligned: D, H multiples of 128).
    dim = 128
    hidden_dim = 256
    block_id, n_blocks = 1, 4
    B, T = 2, 32

    # Deterministic parameter init (mirrors CMix.__init__ shapes).
    ratio_1_to_0 = 1.0 - block_id / n_blocks
    ddd = jnp.arange(dim, dtype=jnp.float32) / dim
    x_k = 1.0 - jnp.power(ddd, ratio_1_to_0 ** 4)                 # (dim,)

    key0 = jax.random.PRNGKey(0)
    k_key, k_val, k_x = jax.random.split(key0, 3)
    bound = 0.5 / math.sqrt(dim)
    w_key = jax.random.uniform(k_key, (hidden_dim, dim),
                               minval=-bound, maxval=bound,
                               dtype=jnp.float32)                 # torch key.weight layout
    # NOTE: the PyTorch module zero-inits value.weight (output would be all
    # zeros); a small deterministic uniform keeps the check non-trivial.
    w_value = jax.random.uniform(k_val, (dim, hidden_dim),
                                 minval=-0.02, maxval=0.02,
                                 dtype=jnp.float32)               # torch value.weight layout

    x = jax.random.normal(k_x, (B, T, dim), dtype=jnp.float32)

    # One-time param prep (transpose + bf16 cast) outside the hot path.
    xk2, wk, wv = prepare_cmix_params(x_k, w_key, w_value)
    ref = cmix_reference(x, x_k, w_key, w_value)
    scale = float(jnp.max(jnp.abs(ref))) + 1e-6

    def _check(out):
        out = jax.block_until_ready(out)
        assert out.shape == (B, T, dim)
        err = float(jnp.max(jnp.abs(out.astype(jnp.float32) - ref)))
        # bf16 matmul operands -> allow a few % of the output scale.
        assert err <= 5e-2 * scale + 1e-4, f"mismatch: err={err}, scale={scale}"

    # 1) Chunked H fallback path (nh=2) + multiple T tiles (nt=4, shift rows).
    _check(cmix_forward_prepared(x, xk2, wk, wv, tm=8, th=128))

    # 2) Resident-weight path with multiple T tiles (exercises prev-row input).
    _check(cmix_forward_prepared(x, xk2, wk, wv, tm=8))

    # 3) Default tile selection (resident weights, single T tile at these shapes).
    _check(cmix_forward_prepared(x, xk2, wk, wv))

    print("KERNEL_OK")
</pallas_src>

<mosaic_0001>
module attributes {stable_mosaic.version = 11 : i64} {
  func.func @_cmix_kernel_chunked(%arg0: i32, %arg1: i32, %arg2: i32, %arg3: memref<1x8x128xf32, #tpu.memory_space<vmem>>, %arg4: memref<1x1x1x128xf32, #tpu.memory_space<vmem>>, %arg5: memref<1x128xf32, #tpu.memory_space<vmem>>, %arg6: memref<128x128xbf16, #tpu.memory_space<vmem>>, %arg7: memref<128x128xbf16, #tpu.memory_space<vmem>>, %arg8: memref<1x8x128xf32, #tpu.memory_space<vmem>>, %arg9: memref<8x128xbf16, #tpu.memory_space<vmem>>, %arg10: memref<8x128xf32, #tpu.memory_space<vmem>>) attributes {dimension_semantics = [#tpu.dimension_semantics<parallel>, #tpu.dimension_semantics<parallel>, #tpu.dimension_semantics<arbitrary>], iteration_bounds = array<i64: 2, 4, 2>, scalar_prefetch = 0 : i64, scratch_operands = 2 : i64, tpu.core_type = #tpu.core_type<tc>, window_params = [{transform_indices = @transform_0, window_bounds = array<i64: 1, 8, 128>}, {transform_indices = @transform_1, window_bounds = array<i64: 1, 1, 1, 128>}, {pipeline_mode = #tpu.pipeline_mode<synchronous>, transform_indices = @transform_2, window_bounds = array<i64: 1, 128>}, {transform_indices = @transform_3, window_bounds = array<i64: 128, 128>}, {transform_indices = @transform_4, window_bounds = array<i64: 128, 128>}, {transform_indices = @transform_5, window_bounds = array<i64: 1, 8, 128>}]} {
    %c0_i32 = arith.constant 0 : i32
    %0 = arith.cmpi eq, %arg2, %c0_i32 : i32
    %1 = arith.extui %0 : i1 to i32
    %c0_i32_0 = arith.constant 0 : i32
    %2 = arith.cmpi ne, %1, %c0_i32_0 : i32
    scf.if %2 {
      %c0_13 = arith.constant 0 : index
      %c0_14 = arith.constant 0 : index
      %c0_15 = arith.constant 0 : index
      %18 = vector.load %arg3[%c0_13, %c0_14, %c0_15] : memref<1x8x128xf32, #tpu.memory_space<vmem>>, vector<1x8x128xf32>
      %19 = vector.shape_cast %18 : vector<1x8x128xf32> to vector<8x128xf32>
      %c0_16 = arith.constant 0 : index
      %c0_17 = arith.constant 0 : index
      %20 = vector.load %arg5[%c0_16, %c0_17] : memref<1x128xf32, #tpu.memory_space<vmem>>, vector<1x128xf32>
      %c0_18 = arith.constant 0 : index
      %c0_19 = arith.constant 0 : index
      %c0_20 = arith.constant 0 : index
      %c0_21 = arith.constant 0 : index
      %21 = vector.load %arg4[%c0_18, %c0_19, %c0_20, %c0_21] : memref<1x1x1x128xf32, #tpu.memory_space<vmem>>, vector<1x1x1x128xf32>
      %22 = vector.shape_cast %21 : vector<1x1x1x128xf32> to vector<1x128xf32>
      %c1_i32_22 = arith.constant 1 : i32
      %23 = tpu.dynamic_rotate %19 by %c1_i32_22 dim 0 : vector<8x128xf32>, i32 -> vector<8x128xf32>
      %24 = tpu.iota {dimensions = array<i32: 0>} : vector<8x128xi32>
      %c0_i32_23 = arith.constant 0 : i32
      %25 = vector.broadcast %c0_i32_23 : i32 to vector<8x128xi32>
      %26 = arith.cmpi eq, %24, %25 : vector<8x128xi32>
      %27 = vector.shape_cast %22 : vector<1x128xf32> to vector<1x128xf32>
      %28 = vector.broadcast %27 : vector<1x128xf32> to vector<8x128xf32>
      %29 = arith.select %26, %28, %23 : vector<8x128xi1>, vector<8x128xf32>
      %30 = arith.subf %29, %19 : vector<8x128xf32>
      %31 = vector.broadcast %20 : vector<1x128xf32> to vector<8x128xf32>
      %32 = arith.mulf %30, %31 : vector<8x128xf32>
      %33 = arith.addf %19, %32 : vector<8x128xf32>
      %34 = arith.truncf %33 : vector<8x128xf32> to vector<8x128xbf16>
      %c0_24 = arith.constant 0 : index
      %c0_25 = arith.constant 0 : index
      %35 = vector.load %arg9[%c0_24, %c0_25] : memref<8x128xbf16, #tpu.memory_space<vmem>>, vector<8x128xbf16>
      tpu.vector_store %arg9[%c0_24, %c0_25], %34 {strides = array<i32>} : memref<8x128xbf16, #tpu.memory_space<vmem>>, vector<8x128xbf16>,
      %cst_26 = arith.constant 0.000000e+00 : f32
      %36 = vector.broadcast %cst_26 : f32 to vector<8x128xf32>
      %c0_27 = arith.constant 0 : index
      %c0_28 = arith.constant 0 : index
      %37 = vector.load %arg10[%c0_27, %c0_28] : memref<8x128xf32, #tpu.memory_space<vmem>>, vector<8x128xf32>
      tpu.vector_store %arg10[%c0_27, %c0_28], %36 {strides = array<i32>} : memref<8x128xf32, #tpu.memory_space<vmem>>, vector<8x128xf32>,
    } else {
    }
    %c0 = arith.constant 0 : index
    %c0_1 = arith.constant 0 : index
    %3 = vector.load %arg9[%c0, %c0_1] : memref<8x128xbf16, #tpu.memory_space<vmem>>, vector<8x128xbf16>
    %c0_2 = arith.constant 0 : index
    %c0_3 = arith.constant 0 : index
    %4 = vector.load %arg6[%c0_2, %c0_3] : memref<128x128xbf16, #tpu.memory_space<vmem>>, vector<128x128xbf16>
    %cst = arith.constant dense<0.000000e+00> : vector<8x128xf32>
    %5 = tpu.matmul %3, %4, %cst {dimension_numbers = #tpu.dot_dimension_numbers<[1], [0], [0], [1], [0, 0, 1, 1], [], []>} : vector<8x128xbf16>, vector<128x128xbf16>, vector<8x128xf32> -> vector<8x128xf32>
    %cst_4 = arith.constant 0.000000e+00 : f32
    %6 = vector.broadcast %cst_4 : f32 to vector<8x128xf32>
    %7 = arith.maximumf %5, %6 : vector<8x128xf32>
    %8 = arith.mulf %7, %7 : vector<8x128xf32>
    %c0_5 = arith.constant 0 : index
    %c0_6 = arith.constant 0 : index
    %9 = vector.load %arg10[%c0_5, %c0_6] : memref<8x128xf32, #tpu.memory_space<vmem>>, vector<8x128xf32>
    %10 = arith.truncf %8 : vector<8x128xf32> to vector<8x128xbf16>
    %c0_7 = arith.constant 0 : index
    %c0_8 = arith.constant 0 : index
    %11 = vector.load %arg7[%c0_7, %c0_8] : memref<128x128xbf16, #tpu.memory_space<vmem>>, vector<128x128xbf16>
    %cst_9 = arith.constant dense<0.000000e+00> : vector<8x128xf32>
    %12 = tpu.matmul %10, %11, %cst_9 {dimension_numbers = #tpu.dot_dimension_numbers<[1], [0], [0], [1], [0, 0, 1, 1], [], []>} : vector<8x128xbf16>, vector<128x128xbf16>, vector<8x128xf32> -> vector<8x128xf32>
    %13 = arith.addf %9, %12 : vector<8x128xf32>
    %c0_10 = arith.constant 0 : index
    %c0_11 = arith.constant 0 : index
    %14 = vector.load %arg10[%c0_10, %c0_11] : memref<8x128xf32, #tpu.memory_space<vmem>>, vector<8x128xf32>
    tpu.vector_store %arg10[%c0_10, %c0_11], %13 {strides = array<i32>} : memref<8x128xf32, #tpu.memory_space<vmem>>, vector<8x128xf32>,
    %c1_i32 = arith.constant 1 : i32
    %15 = arith.cmpi eq, %arg2, %c1_i32 : i32
    %16 = arith.extui %15 : i1 to i32
    %c0_i32_12 = arith.constant 0 : i32
    %17 = arith.cmpi ne, %16, %c0_i32_12 : i32
    scf.if %17 {
      %c0_13 = arith.constant 0 : index
      %c0_14 = arith.constant 0 : index
      %18 = vector.load %arg10[%c0_13, %c0_14] : memref<8x128xf32, #tpu.memory_space<vmem>>, vector<8x128xf32>
      %c0_15 = arith.constant 0 : index
      %c0_16 = arith.constant 0 : index
      %c0_17 = arith.constant 0 : index
      %19 = vector.load %arg8[%c0_15, %c0_16, %c0_17] : memref<1x8x128xf32, #tpu.memory_space<vmem>>, vector<1x8x128xf32>
      %20 = vector.shape_cast %19 : vector<1x8x128xf32> to vector<8x128xf32>
      %21 = vector.shape_cast %18 : vector<8x128xf32> to vector<1x8x128xf32>
      tpu.vector_store %arg8[%c0_15, %c0_16, %c0_17], %21 {strides = array<i32>} : memref<1x8x128xf32, #tpu.memory_space<vmem>>, vector<1x8x128xf32>,
    } else {
    }
    return
  }
  func.func @transform_0(%arg0: i32, %arg1: i32, %arg2: i32) -> (i32, i32, i32) {
    %c0_i32 = arith.constant 0 : i32
    %c0_i32_0 = arith.constant 0 : i32
    return %arg0, %arg1, %c0_i32 : i32, i32, i32
  }
  func.func @transform_1(%arg0: i32, %arg1: i32, %arg2: i32) -> (i32, i32, i32, i32) {
    %c0_i32 = arith.constant 0 : i32
    %c0_i32_0 = arith.constant 0 : i32
    %c0_i32_1 = arith.constant 0 : i32
    return %arg0, %arg1, %c0_i32, %c0_i32_0 : i32, i32, i32, i32
  }
  func.func @transform_2(%arg0: i32, %arg1: i32, %arg2: i32) -> (i32, i32) {
    %c0_i32 = arith.constant 0 : i32
    %c0_i32_0 = arith.constant 0 : i32
    %c0_i32_1 = arith.constant 0 : i32
    return %c0_i32, %c0_i32_0 : i32, i32
  }
  func.func @transform_3(%arg0: i32, %arg1: i32, %arg2: i32) -> (i32, i32) {
    %c0_i32 = arith.constant 0 : i32
    %c0_i32_0 = arith.constant 0 : i32
    return %c0_i32, %arg2 : i32, i32
  }
  func.func @transform_4(%arg0: i32, %arg1: i32, %arg2: i32) -> (i32, i32) {
    %c0_i32 = arith.constant 0 : i32
    %c0_i32_0 = arith.constant 0 : i32
    return %arg2, %c0_i32 : i32, i32
  }
  func.func @transform_5(%arg0: i32, %arg1: i32, %arg2: i32) -> (i32, i32, i32) {
    %c0_i32 = arith.constant 0 : i32
    %c0_i32_0 = arith.constant 0 : i32
    return %arg0, %arg1, %c0_i32 : i32, i32, i32
  }
}

</mosaic_0001>

<llo_original>
// kernel: tpu_custom_call.1
$region0: #{tpu_custom_call.1}
  #allocation0 [shape = 'u32[]', space=smem, size = 0x4, offset = 0x4, fixed_abs, tag = 'smem constant byte address 0x4 - core index']
  #allocation1 [shape = 'u32[72,128]{1,0:T(1,128)}', space=vmem, size = 0x9000, scoped, tag = 'internal scratch']
  #allocation2 [shape = 'bf16[8,128]{1,0:T(8,128)(2,1)}', space=vmem, size = 0x800, scoped, tag = 'scratch operand']
  #allocation3 [shape = 'f32[8,128]{1,0:T(8,128)}', space=vmem, size = 0x1000, scoped, tag = 'scratch operand']
  %s0 = inlined_call_operand.hbm [shape: f32[2,32,128], index: 0, kind: input, shape index: {}]
  %s1 = inlined_call_operand.hbm [shape: f32[2,4,1,128], index: 1, kind: input, shape index: {}]
  %s2 = inlined_call_operand.vmem [shape: f32[1,128], index: 2, kind: input, shape index: {}]
  %s3 = inlined_call_operand.hbm [shape: bf16[128,256], index: 3, kind: input, shape index: {}]
  %s4 = inlined_call_operand.hbm [shape: bf16[256,128], index: 4, kind: input, shape index: {}]
  %s5 = inlined_call_operand.hbm [shape: f32[2,32,128], index: 5, kind: output, shape index: {}]
  %s6 = sld [smem:[#allocation0]]
  $region77: #{tpu_custom_call.1} parent=0
    _
  %s8 = ssub.s32 1, %s6
  %s9 = scalar_select 0, %s8, %s6
  $region1: #{tpu_custom_call.1} parent=0
    #allocation4 [shape = 'u8[8192]{0}', space=vmem, size = 0x2000, scoped, tag = 'input window, operand 0']
    #allocation5 [shape = 's32[2]{0}', space=sflag, size = 0x8, scoped, tag = 'scoped memory for tpu_custom_call.1']
    #allocation6 [shape = 's32[2]{0}', space=sflag, size = 0x8, scoped, tag = 'scoped memory for tpu_custom_call.1']
    #allocation7 [shape = 'u8[1024]{0}', space=vmem, size = 0x400, scoped, tag = 'input window, operand 1']
    #allocation8 [shape = 's32[2]{0}', space=sflag, size = 0x8, scoped, tag = 'scoped memory for tpu_custom_call.1']
    #allocation9 [shape = 'u8[65536]{0}', space=vmem, size = 0x10000, scoped, tag = 'input window, operand 3']
    #allocation10 [shape = 'u8[65536]{0}', space=vmem, size = 0x10000, scoped, tag = 'input window, operand 4']
    #allocation11 [shape = 's32[2]{0}', space=sflag, size = 0x8, scoped, tag = 'scoped memory for tpu_custom_call.1']
    #allocation12 [shape = 'u8[8192]{0}', space=vmem, size = 0x2000, scoped, tag = 'output window, operand 0']
    %10 = vsyncpa [#allocation5], 0
    %s11 = scalar_lea.sflag [#allocation5], 1
    %12 = vsyncpa %s11, 0
    %13 = vsyncpa [#allocation8], 0
    %s14 = scalar_lea.sflag [#allocation8], 1
    %15 = vsyncpa %s14, 0
    %16 = vsyncpa [#allocation11], 0
    %s17 = scalar_lea.sflag [#allocation11], 1
    %18 = vsyncpa %s17, 0
    %19 = vsyncpa [#allocation6], 0
    %s20 = scalar_lea.sflag [#allocation6], 1
    %21 = vsyncpa %s20, 0
    loop: start=0, step=1, limit=18
    $region2: #{tpu_custom_call.1} parent=1 // loop_pre_header
      _
    $region3: #{tpu_custom_call.1} parent=1 // loop_header
      %s23 = sphi 0, %s27
      %p24 = scmp.ge.s32.totalorder %s23, 18
      %s30 = sphi 0, %s49
      %s31 = sphi 0, %s45
      %s32 = sphi 0, %s41
      %s33 = sphi 0, %s30
      %s34 = sphi 0, %s31
      %s35 = sphi 0, %s32
      %s36 = sphi 0, %s33
      %s37 = sphi 0, %s34
      %s38 = sphi 0, %s35
      %s54 = sphi 0, %s56
      %s57 = sphi 0, %s54
      %s58 = sphi 0, %s57
      %s74 = sphi 0, %s58
      %s82 = sphi 0, %s84
      %s85 = sphi 0, %s82
      %s86 = sphi 0, %s85
      %s102 = sphi 0, %s86
      %s106 = sphi 0, %s106
      %s108 = sphi 0, %s106
      %s109 = sphi 0, %s108
      %s123 = sphi 0, %s109
      %s129 = sphi 0, %s131
      %s132 = sphi 0, %s129
      %s133 = sphi 0, %s132
      %s149 = sphi 0, %s133
      %s155 = sphi 0, %s157
      %s158 = sphi 0, %s155
      %s159 = sphi 0, %s158
      %s175 = sphi 0, %s159
      %s183 = sphi 0, %s185
      %s186 = sphi 0, %s183
      %s187 = sphi 0, %s186
      %s203 = sphi 0, %s187
    $region4: #{tpu_custom_call.1} parent=1 // loop_header_branch
      %26 = sbr.rel (%p24) target = $region8
    $region5: #{tpu_custom_call.1} parent=1 // loop_body
      %s28 = ssub.s32 %s23, 1
      %s29 = ssub.s32 %s23, 2
      %s39 = sadd.s32 1, %s32
      %p40 = scmp.ge.s32.totalorder %s39, 2
      %s41 = scalar_select %p40, 0, %s39
      %s42 = sadd.s32 1, %s31
      %s43 = scalar_select %p40, %s42, %s31
      %p44 = scmp.ge.s32.totalorder %s43, 4
      %s45 = scalar_select %p44, 0, %s43
      %s46 = sadd.s32 1, %s30
      %s47 = scalar_select %p44, %s46, %s30
      %p48 = scmp.ge.s32.totalorder %s47, 2
      %s49 = scalar_select %p48, 0, %s47
      %s50 = ssub.s32 %s30, %s49
      %s51 = ssub.s32 %s31, %s45
      %s52 = sor.u32 %s50, %s51
      %p53 = scmp.eq.s32.totalorder %s52, 0
      %s55 = sadd.s32 %s54, 1
      %s56 = scalar_select %p53, %s54, %s55
      %p59 = pneg %p53
      %p60 = scmp.eq.s32.totalorder %s23, 15
      %p61 = por %p59, %p60
      %p62 = scmp.ne.s32.totalorder %s54, %s57
      %p63 = scmp.eq.s32.totalorder %s23, 0
      %p64 = por %p62, %p63
      %p65 = scmp.ne.s32.totalorder %s54, %s57
      %p66 = scmp.eq.s32.totalorder %s28, 15
      %p67 = por %p65, %p66
      %p68 = scmp.ne.s32.totalorder %s57, %s58
      %p69 = scmp.eq.s32.totalorder %s28, 0
      %p70 = por %p68, %p69
      %p71 = scmp.ne.s32.totalorder %s57, %s58
      %p72 = scmp.eq.s32.totalorder %s29, 15
      %p73 = por %p71, %p72
      %p75 = scmp.ne.s32.totalorder %s58, %s74
      %p76 = scmp.eq.s32.totalorder %s29, 0
      %p77 = por %p75, %p76
      %s78 = ssub.s32 %s30, %s49
      %s79 = ssub.s32 %s31, %s45
      %s80 = sor.u32 %s78, %s79
      %p81 = scmp.eq.s32.totalorder %s80, 0
      %s83 = sadd.s32 %s82, 1
      %s84 = scalar_select %p81, %s82, %s83
      %p87 = pneg %p81
      %p88 = scmp.eq.s32.totalorder %s23, 15
      %p89 = por %p87, %p88
      %p90 = scmp.ne.s32.totalorder %s82, %s85
      %p91 = scmp.eq.s32.totalorder %s23, 0
      %p92 = por %p90, %p91
      %p93 = scmp.ne.s32.totalorder %s82, %s85
      %p94 = scmp.eq.s32.totalorder %s28, 15
      %p95 = por %p93, %p94
      %p96 = scmp.ne.s32.totalorder %s85, %s86
      %p97 = scmp.eq.s32.totalorder %s28, 0
      %p98 = por %p96, %p97
      %p99 = scmp.ne.s32.totalorder %s85, %s86
      %p100 = scmp.eq.s32.totalorder %s29, 15
      %p101 = por %p99, %p100
      %p103 = scmp.ne.s32.totalorder %s86, %s102
      %p104 = scmp.eq.s32.totalorder %s29, 0
      %p105 = por %p103, %p104
      %s107 = sadd.s32 %s106, 1
      %p110 = scmp.eq.s32.totalorder %s23, 15
      %p111 = scmp.ne.s32.totalorder %s106, %s108
      %p112 = scmp.eq.s32.totalorder %s23, 0
      %p113 = por %p111, %p112
      %p114 = scmp.ne.s32.totalorder %s106, %s108
      %p115 = scmp.eq.s32.totalorder %s28, 15
      %p116 = por %p114, %p115
      %p117 = scmp.ne.s32.totalorder %s108, %s109
      %p118 = scmp.eq.s32.totalorder %s28, 0
      %p119 = por %p117, %p118
      %p120 = scmp.ne.s32.totalorder %s108, %s109
      %p121 = scmp.eq.s32.totalorder %s29, 15
      %p122 = por %p120, %p121
      %p124 = scmp.ne.s32.totalorder %s109, %s123
      %p125 = scmp.eq.s32.totalorder %s29, 0
      %p126 = por %p124, %p125
      %s127 = ssub.s32 %s32, %s41
      %p128 = scmp.eq.s32.totalorder %s127, 0
      %s130 = sadd.s32 %s129, 1
      %s131 = scalar_select %p128, %s129, %s130
      %p134 = pneg %p128
      %p135 = scmp.eq.s32.totalorder %s23, 15
      %p136 = por %p134, %p135
      %p137 = scmp.ne.s32.totalorder %s129, %s132
      %p138 = scmp.eq.s32.totalorder %s23, 0
      %p139 = por %p137, %p138
      %p140 = scmp.ne.s32.totalorder %s129, %s132
      %p141 = scmp.eq.s32.totalorder %s28, 15
      %p142 = por %p140, %p141
      %p143 = scmp.ne.s32.totalorder %s132, %s133
      %p144 = scmp.eq.s32.totalorder %s28, 0
      %p145 = por %p143, %p144
      %p146 = scmp.ne.s32.totalorder %s132, %s133
      %p147 = scmp.eq.s32.totalorder %s29, 15
      %p148 = por %p146, %p147
      %p150 = scmp.ne.s32.totalorder %s133, %s149
      %p151 = scmp.eq.s32.totalorder %s29, 0
      %p152 = por %p150, %p151
      %s153 = ssub.s32 %s32, %s41
      %p154 = scmp.eq.s32.totalorder %s153, 0
      %s156 = sadd.s32 %s155, 1
      %s157 = scalar_select %p154, %s155, %s156
      %p160 = pneg %p154
      %p161 = scmp.eq.s32.totalorder %s23, 15
      %p162 = por %p160, %p161
      %p163 = scmp.ne.s32.totalorder %s155, %s158
      %p164 = scmp.eq.s32.totalorder %s23, 0
      %p165 = por %p163, %p164
      %p166 = scmp.ne.s32.totalorder %s155, %s158
      %p167 = scmp.eq.s32.totalorder %s28, 15
      %p168 = por %p166, %p167
      %p169 = scmp.ne.s32.totalorder %s158, %s159
      %p170 = scmp.eq.s32.totalorder %s28, 0
      %p171 = por %p169, %p170
      %p172 = scmp.ne.s32.totalorder %s158, %s159
      %p173 = scmp.eq.s32.totalorder %s29, 15
      %p174 = por %p172, %p173
      %p176 = scmp.ne.s32.totalorder %s159, %s175
      %p177 = scmp.eq.s32.totalorder %s29, 0
      %p178 = por %p176, %p177
      %s179 = ssub.s32 %s30, %s49
      %s180 = ssub.s32 %s31, %s45
      %s181 = sor.u32 %s179, %s180
      %p182 = scmp.eq.s32.totalorder %s181, 0
      %s184 = sadd.s32 %s183, 1
      %s185 = scalar_select %p182, %s183, %s184
      %p188 = pneg %p182
      %p189 = scmp.eq.s32.totalorder %s23, 15
      %p190 = por %p188, %p189
      %p191 = scmp.ne.s32.totalorder %s183, %s186
      %p192 = scmp.eq.s32.totalorder %s23, 0
      %p193 = por %p191, %p192
      %p194 = scmp.ne.s32.totalorder %s183, %s186
      %p195 = scmp.eq.s32.totalorder %s28, 15
      %p196 = por %p194, %p195
      %p197 = scmp.ne.s32.totalorder %s186, %s187
      %p198 = scmp.eq.s32.totalorder %s28, 0
      %p199 = por %p197, %p198
      %p200 = scmp.ne.s32.totalorder %s186, %s187
      %p201 = scmp.eq.s32.totalorder %s29, 15
      %p202 = por %p200, %p201
      %p204 = scmp.ne.s32.totalorder %s187, %s203
      %p205 = scmp.eq.s32.totalorder %s29, 0
      %p206 = por %p204, %p205
      %p207 = scmp.le.s32.totalorder 1, %s23
      %p208 = scmp.lt.s32.totalorder %s23, 17
      %p209 = pnand %p207, %p208
      %p210 = pneg %p209
      // Predicated region
      $region9: #{tpu_custom_call.1} parent=5 // pred_check
        _
      $region10: #{tpu_custom_call.1} parent=5 // pred_check_branch
        %212 = sbr.rel (%p209) target = $region12
      $region11: #{tpu_custom_call.1} parent=5 // pred_region
        %s213 = ssub.s32 %s23, 1
        // Predicated region
        $region13: #{tpu_custom_call.1} parent=11 // pred_check
          %p214 = pneg %p119
        $region14: #{tpu_custom_call.1} parent=11 // pred_check_branch
          %216 = sbr.rel (%p214) target = $region16
        $region15: #{tpu_custom_call.1} parent=11 // pred_region
          _
        $region16: #{tpu_custom_call.1} parent=11 // pred_fallthru
          _
      $region12: #{tpu_custom_call.1} parent=5 // pred_fallthru
        _
      %p217 = scmp.lt.s32.totalorder %s23, 16
      // Predicated region
      $region17: #{tpu_custom_call.1} parent=5 // pred_check
        %p218 = pneg %p217
      $region18: #{tpu_custom_call.1} parent=5 // pred_check_branch
        %220 = sbr.rel (%p218) target = $region20
      $region19: #{tpu_custom_call.1} parent=5 // pred_region
        // Predicated region
        $region21: #{tpu_custom_call.1} parent=19 // pred_check
          %p221 = pneg %p64
        $region22: #{tpu_custom_call.1} parent=19 // pred_check_branch
          %223 = sbr.rel (%p221) target = $region24
        $region23: #{tpu_custom_call.1} parent=19 // pred_region
          %s224 = sand.u32 %s54, 1
          %s225 = scalar_lea.sflag [#allocation5], %s224
          %s226 = sand.u32 %s54, 1
          %s227 = smul.addr %s226, 8
          %s228 = scalar_lea.vmem [#allocation4], %s227
          %230 = vsyncadd %s225, 0
          %s231 = smul.addr %s30, 4
          %s232 = sadd.s32 %s31, %s231
          %s233 = smul.addr %s232, 8
          %s234 = scalar_lea.hbm %s0, %s233
          %s236 = sshll.u32 %s234, 4
          %s237 = int_to_ptr.hbm [resolvable:$true] %s236
          %s238 = sshll.u32 %s228, 4
          %s239 = int_to_ptr.vmem [resolvable:$true] %s238
          %241 = dma.hbm_to_vmem [thread:$0]  %s237, 128, %s239, %s225
        $region24: #{tpu_custom_call.1} parent=19 // pred_fallthru
          _
        // Predicated region
        $region25: #{tpu_custom_call.1} parent=19 // pred_check
          %p242 = pneg %p92
        $region26: #{tpu_custom_call.1} parent=19 // pred_check_branch
          %244 = sbr.rel (%p242) target = $region28
        $region27: #{tpu_custom_call.1} parent=19 // pred_region
          %s245 = sand.u32 %s23, 1
          %s246 = scalar_lea.sflag [#allocation8], %s245
          %s247 = sand.u32 %s82, 1
          %s248 = scalar_lea.vmem [#allocation7], %s247
          %250 = vsyncadd %s246, 0
          %s251 = smul.addr %s30, 4
          %s252 = sadd.s32 %s31, %s251
          %s253 = scalar_lea.hbm %s1, %s252
          %s255 = sshll.u32 %s253, 4
          %s256 = int_to_ptr.hbm [resolvable:$true] %s255
          %s257 = sshll.u32 %s248, 4
          %s258 = int_to_ptr.vmem [resolvable:$true] %s257
          %260 = dma.hbm_to_vmem [thread:$0]  %s256, 16, %s258, %s246
        $region28: #{tpu_custom_call.1} parent=19 // pred_fallthru
          _
        // Predicated region
        $region29: #{tpu_custom_call.1} parent=19 // pred_check
          %p261 = pneg %p139
        $region30: #{tpu_custom_call.1} parent=19 // pred_check_branch
          %263 = sbr.rel (%p261) target = $region32
        $region31: #{tpu_custom_call.1} parent=19 // pred_region
          %s264 = sand.u32 %s23, 1
          %s265 = scalar_lea.sflag [#allocation8], %s264
          %s266 = sand.u32 %s129, 1
          %s267 = smul.addr %s266, 64
          %s268 = scalar_lea.vmem [#allocation9], %s267
          %270 = vsyncadd %s265, 0
          %s271 = smul.addr %s32, 4
          %s272 = scalar_lea.hbm %s3, %s271
          %s273 = sshll.u32 %s272, 4
          %s274 = int_to_ptr.hbm [resolvable:$true] %s273
          %s275 = sshll.u32 %s268, 4
          %s276 = int_to_ptr.vmem [resolvable:$true] %s275
          %281 = dma.hbm_to_vmem [thread:$0]  %s274, 1024, %s276, %s265, 128, 64, 4
        $region32: #{tpu_custom_call.1} parent=19 // pred_fallthru
          _
        // Predicated region
        $region33: #{tpu_custom_call.1} parent=19 // pred_check
          %p282 = pneg %p165
        $region34: #{tpu_custom_call.1} parent=19 // pred_check_branch
          %284 = sbr.rel (%p282) target = $region36
        $region35: #{tpu_custom_call.1} parent=19 // pred_region
          %s285 = sand.u32 %s155, 1
          %s286 = scalar_lea.sflag [#allocation11], %s285
          %s287 = sand.u32 %s155, 1
          %s288 = smul.addr %s287, 64
          %s289 = scalar_lea.vmem [#allocation10], %s288
          %s290 = smul.u32 16, %s32
          %292 = vsyncadd %s286, 0
          %s293 = smul.addr %s290, 4
          %s294 = scalar_lea.hbm %s4, %s293
          %s295 = sshll.u32 %s294, 4
          %s296 = int_to_ptr.hbm [resolvable:$true] %s295
          %s297 = sshll.u32 %s289, 4
          %s298 = int_to_ptr.vmem [resolvable:$true] %s297
          %303 = dma.hbm_to_vmem [thread:$0]  %s296, 1024, %s298, %s286, 64, 64, 4
        $region36: #{tpu_custom_call.1} parent=19 // pred_fallthru
          _
      $region20: #{tpu_custom_call.1} parent=5 // pred_fallthru
        _
      %p304 = scmp.le.s32.totalorder 1, %s23
      %p305 = scmp.lt.s32.totalorder %s23, 17
      %p306 = pnand %p304, %p305
      %p307 = pneg %p306
      // Predicated region
      $region37: #{tpu_custom_call.1} parent=5 // pred_check
        _
      $region38: #{tpu_custom_call.1} parent=5 // pred_check_branch
        %309 = sbr.rel (%p306) target = $region40
      $region39: #{tpu_custom_call.1} parent=5 // pred_region
        %s310 = ssub.s32 %s23, 1
        %s311 = sand.u32 %s57, 1
        %s312 = scalar_lea.sflag [#allocation5], %s311
        %s313 = sand.u32 %s57, 1
        %s314 = smul.addr %s313, 8
        %s315 = scalar_lea.vmem [#allocation4], %s314
        // Predicated region
        $region41: #{tpu_custom_call.1} parent=39 // pred_check
          %p316 = pneg %p70
        $region42: #{tpu_custom_call.1} parent=39 // pred_check_branch
          %318 = sbr.rel (%p316) target = $region44
        $region43: #{tpu_custom_call.1} parent=39 // pred_region
          %320 = dma.done %s312, 128
        $region44: #{tpu_custom_call.1} parent=39 // pred_fallthru
          _
        %s321 = sand.u32 %s28, 1
        %s322 = scalar_lea.sflag [#allocation8], %s321
        %s323 = sand.u32 %s85, 1
        %s324 = scalar_lea.vmem [#allocation7], %s323
        // Predicated region
        $region45: #{tpu_custom_call.1} parent=39 // pred_check
          %p325 = pneg %p98
        $region46: #{tpu_custom_call.1} parent=39 // pred_check_branch
          %327 = sbr.rel (%p325) target = $region48
        $region47: #{tpu_custom_call.1} parent=39 // pred_region
          %329 = dma.done %s322, 16
        $region48: #{tpu_custom_call.1} parent=39 // pred_fallthru
          _
        %s330 = sand.u32 %s28, 1
        %s331 = scalar_lea.sflag [#allocation8], %s330
        %s332 = sand.u32 %s132, 1
        %s333 = smul.addr %s332, 64
        %s334 = scalar_lea.vmem [#allocation9], %s333
        // Predicated region
        $region49: #{tpu_custom_call.1} parent=39 // pred_check
          %p335 = pneg %p145
        $region50: #{tpu_custom_call.1} parent=39 // pred_check_branch
          %337 = sbr.rel (%p335) target = $region52
        $region51: #{tpu_custom_call.1} parent=39 // pred_region
          %339 = dma.done %s331, 1024
        $region52: #{tpu_custom_call.1} parent=39 // pred_fallthru
          _
        %s340 = sand.u32 %s158, 1
        %s341 = scalar_lea.sflag [#allocation11], %s340
        %s342 = sand.u32 %s158, 1
        %s343 = smul.addr %s342, 64
        %s344 = scalar_lea.vmem [#allocation10], %s343
        // Predicated region
        $region53: #{tpu_custom_call.1} parent=39 // pred_check
          %p345 = pneg %p171
        $region54: #{tpu_custom_call.1} parent=39 // pred_check_branch
          %347 = sbr.rel (%p345) target = $region56
        $region55: #{tpu_custom_call.1} parent=39 // pred_region
          %349 = dma.done %s341, 1024
        $region56: #{tpu_custom_call.1} parent=39 // pred_fallthru
          _
        %s350 = sand.u32 %s57, 1
        %s351 = scalar_lea.sflag [#allocation5], %s350
        %s352 = sand.u32 %s57, 1
        %s353 = smul.addr %s352, 8
        %s354 = scalar_lea.vmem [#allocation4], %s353
        %p355 = pneg %p70
        %p356 = pneg %p67
        %s357 = sand.u32 %s28, 1
        %s358 = scalar_lea.sflag [#allocation8], %s357
        %s359 = sand.u32 %s85, 1
        %s360 = scalar_lea.vmem [#allocation7], %s359
        %p361 = pneg %p98
        %p362 = pneg %p95
        %p363 = pneg %p119
        %p364 = pneg %p116
        %s365 = sand.u32 %s28, 1
        %s366 = scalar_lea.sflag [#allocation8], %s365
        %s367 = sand.u32 %s132, 1
        %s368 = smul.addr %s367, 64
        %s369 = scalar_lea.vmem [#allocation9], %s368
        %p370 = pneg %p145
        %p371 = pneg %p142
        %s372 = sand.u32 %s158, 1
        %s373 = scalar_lea.sflag [#allocation11], %s372
        %s374 = sand.u32 %s158, 1
        %s375 = smul.addr %s374, 64
        %s376 = scalar_lea.vmem [#allocation10], %s375
        %p377 = pneg %p171
        %p378 = pneg %p168
        %p379 = pneg %p199
        %p380 = pneg %p196
        %s381 = sand.u32 %s186, 1
        %s382 = scalar_lea.sflag [#allocation6], %s381
        %s383 = sand.u32 %s186, 1
        %s384 = smul.addr %s383, 8
        %s385 = scalar_lea.vmem [#allocation12], %s384
        %s386 = smul.u32 16, %s35
        %p387 = scmp.eq.s32.totalorder %s35, 0
        // Predicated region
        $region57: #{tpu_custom_call.1} parent=39 // pred_check
          %p388 = pneg %p387
        $region58: #{tpu_custom_call.1} parent=39 // pred_check_branch
          %390 = sbr.rel (%p388) target = $region60
        $region59: #{tpu_custom_call.1} parent=39 // pred_region
          %v391 = vld [vmem:[%s315] sm:$0xff]
          %v392 = vld [vmem:[%s2] sm:$0x1]
          %v393 = vld [vmem:[%s324] sm:$0x1]
          %v394 = vrot.slane %v391, 7
          %v395 = vlaneseq
          %v396 = vshrl.u32 %v395, 7
          %vm397 = vcmp.eq.s32.totalorder %v396, 0
          %v399 = vperm.slane %v393, 0
          %v401 = vsel %vm397, %v399, %v394
          %v402 = vsub.f32 %v401, %v391
          %v404 = vperm.slane %v392, 0
          %v406 = vmul.f32 %v402, %v404
          %v407 = vadd.f32 %v391, %v406
          %v408 = vpack.c.bf16 %v407, %v407
          %409 = vst [vmem:[#allocation2] sm:$0xf] %v408
          %410 = vst [vmem:[#allocation3] sm:$0xff] 0.0
        $region60: #{tpu_custom_call.1} parent=39 // pred_fallthru
          _
        %v411 = vld [vmem:[#allocation2] sm:$0xf]
        %v412 = vld [vmem:[%s334] sm:$0xf]
        %v413 = vld [vmem:[%s334 + $0x4] sm:$0xf]
        %v414 = vld [vmem:[%s334 + $0x8] sm:$0xf]
        %v415 = vld [vmem:[%s334 + $0xc] sm:$0xf]
        %v416 = vld [vmem:[%s334 + $0x10] sm:$0xf]
        %v417 = vld [vmem:[%s334 + $0x14] sm:$0xf]
        %v418 = vld [vmem:[%s334 + $0x18] sm:$0xf]
        %v419 = vld [vmem:[%s334 + $0x1c] sm:$0xf]
        %v420 = vld [vmem:[%s334 + $0x20] sm:$0xf]
        %v421 = vld [vmem:[%s334 + $0x24] sm:$0xf]
        %v422 = vld [vmem:[%s334 + $0x28] sm:$0xf]
        %v423 = vld [vmem:[%s334 + $0x2c] sm:$0xf]
        %v424 = vld [vmem:[%s334 + $0x30] sm:$0xf]
        %v425 = vld [vmem:[%s334 + $0x34] sm:$0xf]
        %v426 = vld [vmem:[%s334 + $0x38] sm:$0xf]
        %v427 = vld [vmem:[%s334 + $0x3c] sm:$0xf]
        %v444 = vunpack.c.l.b16 %v412
        %v445 = vunpack.c.l.b16 %v413
        %v446 = vunpack.c.l.b16 %v414
        %v447 = vunpack.c.l.b16 %v415
        %v448 = vunpack.c.l.b16 %v416
        %v449 = vunpack.c.l.b16 %v417
        %v450 = vunpack.c.l.b16 %v418
        %v451 = vunpack.c.l.b16 %v419
        %v452 = vunpack.c.l.b16 %v420
        %v453 = vunpack.c.l.b16 %v421
        %v454 = vunpack.c.l.b16 %v422
        %v455 = vunpack.c.l.b16 %v423
        %v456 = vunpack.c.l.b16 %v424
        %v457 = vunpack.c.l.b16 %v425
        %v458 = vunpack.c.l.b16 %v426
        %v459 = vunpack.c.l.b16 %v427
        %v460 = vpack.c.b16 %v445, %v444
        %v461 = vpack.c.b16 %v447, %v446
        %v462 = vpack.c.b16 %v449, %v448
        %v463 = vpack.c.b16 %v451, %v450
        %v464 = vpack.c.b16 %v453, %v452
        %v465 = vpack.c.b16 %v455, %v454
        %v466 = vpack.c.b16 %v457, %v456
        %v467 = vpack.c.b16 %v459, %v458
        %476 = vmatpush.bf16.msra.mxu0 %v467
        %477 = vmatpush.bf16.msra.mxu0 %v466
        %478 = vmatpush.bf16.msra.mxu0 %v465
        %479 = vmatpush.bf16.msra.mxu0 %v464
        %480 = vmatpush.bf16.msra.mxu0 %v463
        %481 = vmatpush.bf16.msra.mxu0 %v462
        %482 = vmatpush.bf16.msra.mxu0 %v461
        %483 = vmatpush.bf16.msra.mxu0 %v460
        %484 = vmatmul.bf16.gmra.mxu0 %v411
        %v485 = vpop.f32.mrf.mxu0
        %v486 = vadd.f32 0.0, %v485
        %v487 = vpop.f32.mrf.mxu0
        %488 = vdwg.mxu0
        %v489 = vmax.f32 %v486, 0.0
        %v490 = vmul.f32 %v489, %v489
        %v491 = vld [vmem:[#allocation3] sm:$0xff]
        %v492 = vpack.c.bf16 %v490, %v490
        %v493 = vld [vmem:[%s344] sm:$0xf]
        %v494 = vld [vmem:[%s344 + $0x4] sm:$0xf]
        %v495 = vld [vmem:[%s344 + $0x8] sm:$0xf]
        %v496 = vld [vmem:[%s344 + $0xc] sm:$0xf]
        %v497 = vld [vmem:[%s344 + $0x10] sm:$0xf]
        %v498 = vld [vmem:[%s344 + $0x14] sm:$0xf]
        %v499 = vld [vmem:[%s344 + $0x18] sm:$0xf]
        %v500 = vld [vmem:[%s344 + $0x1c] sm:$0xf]
        %v501 = vld [vmem:[%s344 + $0x20] sm:$0xf]
        %v502 = vld [vmem:[%s344 + $0x24] sm:$0xf]
        %v503 = vld [vmem:[%s344 + $0x28] sm:$0xf]
        %v504 = vld [vmem:[%s344 + $0x2c] sm:$0xf]
        %v505 = vld [vmem:[%s344 + $0x30] sm:$0xf]
        %v506 = vld [vmem:[%s344 + $0x34] sm:$0xf]
        %v507 = vld [vmem:[%s344 + $0x38] sm:$0xf]
        %v508 = vld [vmem:[%s344 + $0x3c] sm:$0xf]
        %v525 = vunpack.c.l.b16 %v493
        %v526 = vunpack.c.l.b16 %v494
        %v527 = vunpack.c.l.b16 %v495
        %v528 = vunpack.c.l.b16 %v496
        %v529 = vunpack.c.l.b16 %v497
        %v530 = vunpack.c.l.b16 %v498
        %v531 = vunpack.c.l.b16 %v499
        %v532 = vunpack.c.l.b16 %v500
        %v533 = vunpack.c.l.b16 %v501
        %v534 = vunpack.c.l.b16 %v502
        %v535 = vunpack.c.l.b16 %v503
        %v536 = vunpack.c.l.b16 %v504
        %v537 = vunpack.c.l.b16 %v505
        %v538 = vunpack.c.l.b16 %v506
        %v539 = vunpack.c.l.b16 %v507
        %v540 = vunpack.c.l.b16 %v508
        %v541 = vpack.c.b16 %v526, %v525
        %v542 = vpack.c.b16 %v528, %v527
        %v543 = vpack.c.b16 %v530, %v529
        %v544 = vpack.c.b16 %v532, %v531
        %v545 = vpack.c.b16 %v534, %v533
        %v546 = vpack.c.b16 %v536, %v535
        %v547 = vpack.c.b16 %v538, %v537
        %v548 = vpack.c.b16 %v540, %v539
        %557 = vmatpush.bf16.msra.mxu0 %v548
        %558 = vmatpush.bf16.msra.mxu0 %v547
        %559 = vmatpush.bf16.msra.mxu0 %v546
        %560 = vmatpush.bf16.msra.mxu0 %v545
        %561 = vmatpush.bf16.msra.mxu0 %v544
        %562 = vmatpush.bf16.msra.mxu0 %v543
        %563 = vmatpush.bf16.msra.mxu0 %v542
        %564 = vmatpush.bf16.msra.mxu0 %v541
        %565 = vmatmul.bf16.gmra.mxu0 %v492
        %v566 = vpop.f32.mrf.mxu0
        %v567 = vadd.f32 0.0, %v566
        %v568 = vpop.f32.mrf.mxu0
        %569 = vdwg.mxu0
        %v570 = vadd.f32 %v491, %v567
        %571 = vst [vmem:[#allocation3] sm:$0xff] %v570
        %p572 = scmp.eq.s32.totalorder %s35, 1
        // Predicated region
        $region61: #{tpu_custom_call.1} parent=39 // pred_check
          %p573 = pneg %p572
        $region62: #{tpu_custom_call.1} parent=39 // pred_check_branch
          %575 = sbr.rel (%p573) target = $region64
        $region63: #{tpu_custom_call.1} parent=39 // pred_region
          %v576 = vld [vmem:[#allocation3] sm:$0xff]
          %577 = vst [vmem:[%s385] sm:$0xff] %v576
        $region64: #{tpu_custom_call.1} parent=39 // pred_fallthru
          _
        %s578 = sand.u32 %s186, 1
        %s579 = scalar_lea.sflag [#allocation6], %s578
        %s580 = sand.u32 %s186, 1
        %s581 = smul.addr %s580, 8
        %s582 = scalar_lea.vmem [#allocation12], %s581
        // Predicated region
        $region65: #{tpu_custom_call.1} parent=39 // pred_check
          %p583 = pneg %p196
        $region66: #{tpu_custom_call.1} parent=39 // pred_check_branch
          %585 = sbr.rel (%p583) target = $region68
        $region67: #{tpu_custom_call.1} parent=39 // pred_region
          %587 = vsyncadd %s579, 0
          %s588 = smul.addr %s33, 4
          %s589 = sadd.s32 %s34, %s588
          %s590 = smul.addr %s589, 8
          %s591 = scalar_lea.hbm %s5, %s590
          %s593 = sshll.u32 %s582, 4
          %s594 = int_to_ptr.vmem [resolvable:$true] %s593
          %s595 = sshll.u32 %s591, 4
          %s596 = int_to_ptr.hbm [resolvable:$true] %s595
          %598 = dma.vmem_to_hbm [thread:$0]  %s594, 128, %s596, %s579
        $region68: #{tpu_custom_call.1} parent=39 // pred_fallthru
          _
      $region40: #{tpu_custom_call.1} parent=5 // pred_fallthru
        _
      %p599 = scmp.le.s32.totalorder 2, %s23
      // Predicated region
      $region69: #{tpu_custom_call.1} parent=5 // pred_check
        %p600 = pneg %p599
      $region70: #{tpu_custom_call.1} parent=5 // pred_check_branch
        %602 = sbr.rel (%p600) target = $region72
      $region71: #{tpu_custom_call.1} parent=5 // pred_region
        %s603 = ssub.s32 %s23, 2
        // Predicated region
        $region73: #{tpu_custom_call.1} parent=71 // pred_check
          %p604 = pneg %p202
        $region74: #{tpu_custom_call.1} parent=71 // pred_check_branch
          %606 = sbr.rel (%p604) target = $region76
        $region75: #{tpu_custom_call.1} parent=71 // pred_region
          %s607 = sand.u32 %s187, 1
          %s608 = scalar_lea.sflag [#allocation6], %s607
          %s609 = sand.u32 %s187, 1
          %s610 = smul.addr %s609, 8
          %s611 = scalar_lea.vmem [#allocation12], %s610
          %613 = dma.done %s608, 128
        $region76: #{tpu_custom_call.1} parent=71 // pred_fallthru
          _
      $region72: #{tpu_custom_call.1} parent=5 // pred_fallthru
        _
    $region6: #{tpu_custom_call.1} parent=1 // loop_footer
      %s27 = sadd.s32 1, %s23
    $region7: #{tpu_custom_call.1} parent=1 // loop_footer_branch
      %22 = sbr.rel target = $region3
    $region8: #{tpu_custom_call.1} parent=1 // loop_exit
      _
    %614 = vsyncpa [#allocation5], 1
    %s615 = scalar_lea.sflag [#allocation5], 1
    %616 = vsyncpa %s615, 1
    %617 = vsyncpa [#allocation8], 1
    %s618 = scalar_lea.sflag [#allocation8], 1
    %619 = vsyncpa %s618, 1
    %620 = vsyncpa [#allocation11], 1
    %s621 = scalar_lea.sflag [#allocation11], 1
    %622 = vsyncpa %s621, 1
    %623 = vsyncpa [#allocation6], 1
    %s624 = scalar_lea.sflag [#allocation6], 1
    %625 = vsyncpa %s624, 1

</llo_original>
